<compile_context>
chip_gen: v5e
topology: v5e:2x2
jax: 0.10.0
libtpu: 0.0.40
codegen_flags: <defaults>
</compile_context>

<pallas_src>
import functools

import numpy as np
import jax
import jax.numpy as jnp
from jax.experimental import pallas as pl
from jax.experimental.pallas import tpu as pltpu


def grouped_model_kernel(x_ref, lig_ref, w1_ref, w2_ref, b2_ref, w3_ref,
                         preds_ref, *, tp):
    """One grid step = TP poses.

    x_ref    : (tp, N, F)  atom features for this group of poses
    lig_ref  : (tp, N, 1)  0/1 ligand mask
    w1       : (F, H)   w2: (H, H)   b2: (1, H) f32   w3: (1, H) f32 row
    preds_ref: (1, 1, tp) lane-dense per-pose (pre-readout, pre-b3) predictions
    """
    f32 = jnp.float32
    # f32 accumulation for the atom-sum pooling even when inputs arrive bf16.
    x = x_ref[...].astype(f32)        # (tp, N, F)
    lig = lig_ref[...].astype(f32)    # (tp, N, 1)

    # Representation block: per-pose sum pooling for [complex; protein; ligand]
    # via mask multiply (VPU) + sublane reduce (XLU).  Protein uses the exact
    # (1 - lig) mask (no rep_c - rep_l cancellation).
    pooled_c = jnp.sum(x, axis=1)                               # (tp, F)
    pooled_l = jnp.sum(x * lig, axis=1)                         # (tp, F)
    pooled_p = jnp.sum(x * (1.0 - lig), axis=1)                 # (tp, F)
    pooled = jnp.concatenate([pooled_c, pooled_p, pooled_l], axis=0)   # (3tp, F)

    # Linear embedding (shared W1) for all 3*tp pooled representations.
    reps = jnp.dot(pooled.astype(w1_ref.dtype), w1_ref[...],
                   preferred_element_type=f32)                  # (3tp, H)

    # Strategy block: energy MLP hidden layer, batched over all 3*tp inputs.
    hidden = jnp.maximum(
        jnp.dot(reps.astype(w2_ref.dtype), w2_ref[...],
                preferred_element_type=f32) + b2_ref[...],
        0.0)                                                    # (3tp, H), f32

    # DeltaStrategy: E_c - E_p - E_l.  relu is per-term, but the final linear
    # projection commutes with the subtraction, so combine hidden first (1/3 of
    # the projection work).  b3 cancels to -b3, applied in the wrapper.
    delta = hidden[:tp] - hidden[tp:2 * tp] - hidden[2 * tp:]   # (tp, H)

    # w3(1,H) contracted against delta(tp,H) on its H axis -> (1, tp): the
    # result comes out lane-major, so the store is a dense row, not a masked
    # (tp, 1) column.
    pred_row = jax.lax.dot_general(
        w3_ref[...], delta,
        dimension_numbers=(((1,), (1,)), ((), ())),
        preferred_element_type=f32)                             # (1, tp)

    preds_ref[...] = pred_row.reshape(1, 1, tp)


def _padded_block_bytes(shape, dtype):
    """(8,128)-padded VMEM footprint of one block buffer."""
    shape = tuple(int(d) for d in shape)
    if len(shape) == 1:
        shape = (1,) + shape
    lead, sub, lane = shape[:-2], shape[-2], shape[-1]
    sub = -(-sub // 8) * 8
    lane = -(-lane // 128) * 128
    n = 1
    for d in lead:
        n *= d
    return n * sub * lane * np.dtype(dtype).itemsize


def grouped_model_forward(x, lig_mask, w1, w2, b2, w3, b3, *, tp=None,
                          compute_dtype=jnp.float32):
    """Returns (comb_pred, per-pose preds), mirroring GroupedModel.forward."""
    P, N, F = x.shape
    H = w1.shape[1]

    if tp is None:
        # Fill MXU rows (the MLP matmul M-dim is 3*tp) while keeping at least
        # two grid steps when there are enough poses (v7x megacore sharding).
        tp = min(96, max(8, ((-(-P // 2)) + 7) // 8 * 8))
    assert tp % 8 == 0, "tp must be a multiple of 8 (sublane-aligned slices)"

    G = pl.cdiv(P, tp)
    P_pad = G * tp
    if P_pad != P:
        pad = P_pad - P
        x = jnp.pad(x, ((0, pad), (0, 0), (0, 0)))
        lig_mask = jnp.pad(lig_mask, ((0, pad), (0, 0), (0, 0)))

    # Boundary casts: activations/weights may go bf16; biases stay f32.
    x_c = x.astype(compute_dtype)
    lig_c = lig_mask.astype(compute_dtype)
    w1_c = w1.astype(compute_dtype)
    w2_c = w2.astype(compute_dtype)
    b2_f = b2.reshape(1, H).astype(jnp.float32)
    w3_row = w3.reshape(1, H).astype(jnp.float32)

    # Explicit VMEM budget (double-buffered blocks + headroom), honest against
    # v7x's 64 MiB physical / 32 MiB default-scoped ceiling.
    est = 2 * sum([
        _padded_block_bytes((tp, N, F), compute_dtype),
        _padded_block_bytes((tp, N, 1), compute_dtype),
        _padded_block_bytes((F, H), compute_dtype),
        _padded_block_bytes((H, H), compute_dtype),
        _padded_block_bytes((1, H), jnp.float32),
        _padded_block_bytes((1, H), jnp.float32),
        _padded_block_bytes((1, 1, tp), jnp.float32),
    ])
    vmem_limit = int(min(32 * 1024 * 1024, max(8 * 1024 * 1024, 4 * est)))

    kernel = functools.partial(grouped_model_kernel, tp=tp)

    preds_rows = pl.pallas_call(
        kernel,
        out_shape=jax.ShapeDtypeStruct((G, 1, tp), jnp.float32),
        grid_spec=pltpu.PrefetchScalarGridSpec(
            num_scalar_prefetch=0,
            grid=(G,),
            in_specs=[
                pl.BlockSpec((tp, N, F), lambda g: (g, 0, 0)),  # x (per group)
                pl.BlockSpec((tp, N, 1), lambda g: (g, 0, 0)),  # lig mask (per group)
                pl.BlockSpec((F, H), lambda g: (0, 0)),         # W1 (grid-invariant)
                pl.BlockSpec((H, H), lambda g: (0, 0)),         # W2 (grid-invariant)
                pl.BlockSpec((1, H), lambda g: (0, 0)),         # b2
                pl.BlockSpec((1, H), lambda g: (0, 0)),         # w3 (row)
            ],
            out_specs=pl.BlockSpec((1, 1, tp), lambda g: (g, 0, 0)),  # lane-dense row
        ),
        compiler_params=pltpu.CompilerParams(
            dimension_semantics=("parallel",),     # no cross-step carry
            vmem_limit_bytes=vmem_limit,
        ),
    )(x_c, lig_c, w1_c, w2_c, b2_f, w3_row)

    # Net b3 contribution of E_c - E_p - E_l is -b3: applied here (scalar).
    preds = preds_rows.reshape(P_pad, 1)[:P] - b3.astype(jnp.float32).reshape(1, 1)
    # NOTE: padded poses carry garbage (-relu(b2)@w3 - b3) and are sliced off
    # above — preds_rows must never be consumed directly.
    comb = jnp.mean(preds, axis=0, keepdims=True)   # MeanCombination (wrapper)
    return comb, preds


def reference_forward(x, lig_mask, w1, w2, b2, w3, b3):
    """Pure-JAX reference of the same forward semantics (for validation)."""
    def energy(r):
        hidden = jnp.maximum(r @ w2 + b2, 0.0)
        return hidden @ w3 + b3

    h = jnp.einsum("pnf,fh->pnh", x, w1)                      # (P, N, H)
    rep_c = jnp.sum(h, axis=1)                                # (P, H)
    rep_l = jnp.sum(h * lig_mask, axis=1)                     # (P, H)
    rep_p = rep_c - rep_l
    preds = energy(rep_c) - energy(rep_p) - energy(rep_l)     # (P, 1)
    comb = jnp.mean(preds, axis=0, keepdims=True)             # (1, 1)
    return comb, preds


if __name__ == "__main__":
    P, N, F, H = 3, 16, 8, 32   # poses, atoms, input features, hidden dim

    key = jax.random.PRNGKey(0)
    k_x, k_m, k_w1, k_w2, k_b2, k_w3, k_b3 = jax.random.split(key, 7)

    x = jax.random.normal(k_x, (P, N, F), dtype=jnp.float32)
    # boolean "lig" split mask, stored as float 0/1 with a trailing singleton dim
    lig_mask = (jax.random.uniform(k_m, (P, N, 1)) < 0.5).astype(jnp.float32)

    # Deterministic synthetic parameters (shapes implied by the blocks above).
    w1 = 0.1 * jax.random.normal(k_w1, (F, H), dtype=jnp.float32)
    w2 = 0.1 * jax.random.normal(k_w2, (H, H), dtype=jnp.float32)
    b2 = 0.1 * jax.random.normal(k_b2, (1, H), dtype=jnp.float32)
    w3 = 0.1 * jax.random.normal(k_w3, (H, 1), dtype=jnp.float32)
    b3 = 0.1 * jax.random.normal(k_b3, (1, 1), dtype=jnp.float32)

    # f32 here so validation against the f32 reference stays tight; pass
    # compute_dtype=jnp.bfloat16 for production-shape runs on v6e/v7x.
    comb, preds = grouped_model_forward(x, lig_mask, w1, w2, b2, w3, b3)
    jax.block_until_ready((comb, preds))

    comb_gold, preds_gold = reference_forward(x, lig_mask, w1, w2, b2, w3, b3)
    assert preds.shape == preds_gold.shape, "per-pose preds shape mismatch"
    assert jnp.allclose(preds, preds_gold, rtol=1e-4, atol=1e-5), "per-pose preds mismatch"
    assert jnp.allclose(comb, comb_gold, rtol=1e-4, atol=1e-5), "combined pred mismatch"

    print("KERNEL_OK")
</pallas_src>

<mosaic_0001>
module attributes {stable_mosaic.version = 11 : i64} {
  func.func @grouped_model_kernel(%arg0: i32, %arg1: memref<8x16x8xf32, #tpu.memory_space<vmem>>, %arg2: memref<8x16x1xf32, #tpu.memory_space<vmem>>, %arg3: memref<8x32xf32, #tpu.memory_space<vmem>>, %arg4: memref<32x32xf32, #tpu.memory_space<vmem>>, %arg5: memref<1x32xf32, #tpu.memory_space<vmem>>, %arg6: memref<1x32xf32, #tpu.memory_space<vmem>>, %arg7: memref<1x1x8xf32, #tpu.memory_space<vmem>>) attributes {dimension_semantics = [#tpu.dimension_semantics<parallel>], iteration_bounds = array<i64: 1>, scalar_prefetch = 0 : i64, scratch_operands = 0 : i64, tpu.core_type = #tpu.core_type<tc>, window_params = [{transform_indices = @transform_0, window_bounds = array<i64: 8, 16, 8>}, {transform_indices = @transform_1, window_bounds = array<i64: 8, 16, 1>}, {pipeline_mode = #tpu.pipeline_mode<synchronous>, transform_indices = @transform_2, window_bounds = array<i64: 8, 32>}, {pipeline_mode = #tpu.pipeline_mode<synchronous>, transform_indices = @transform_3, window_bounds = array<i64: 32, 32>}, {pipeline_mode = #tpu.pipeline_mode<synchronous>, transform_indices = @transform_4, window_bounds = array<i64: 1, 32>}, {pipeline_mode = #tpu.pipeline_mode<synchronous>, transform_indices = @transform_5, window_bounds = array<i64: 1, 32>}, {transform_indices = @transform_6, window_bounds = array<i64: 1, 1, 8>}]} {
    %c0 = arith.constant 0 : index
    %c0_0 = arith.constant 0 : index
    %c0_1 = arith.constant 0 : index
    %0 = vector.load %arg1[%c0, %c0_0, %c0_1] : memref<8x16x8xf32, #tpu.memory_space<vmem>>, vector<8x16x8xf32>
    %c0_2 = arith.constant 0 : index
    %c0_3 = arith.constant 0 : index
    %c0_4 = arith.constant 0 : index
    %1 = vector.load %arg2[%c0_2, %c0_3, %c0_4] : memref<8x16x1xf32, #tpu.memory_space<vmem>>, vector<8x16x1xf32>
    %cst = arith.constant dense<0.000000e+00> : vector<8x8xf32>
    %2 = vector.multi_reduction <add>, %0, %cst [1] : vector<8x16x8xf32> to vector<8x8xf32>
    %3 = vector.broadcast %1 : vector<8x16x1xf32> to vector<8x16x8xf32>
    %4 = arith.mulf %0, %3 : vector<8x16x8xf32>
    %cst_5 = arith.constant dense<0.000000e+00> : vector<8x8xf32>
    %5 = vector.multi_reduction <add>, %4, %cst_5 [1] : vector<8x16x8xf32> to vector<8x8xf32>
    %cst_6 = arith.constant 1.000000e+00 : f32
    %6 = vector.broadcast %cst_6 : f32 to vector<8x16x1xf32>
    %7 = arith.subf %6, %1 : vector<8x16x1xf32>
    %8 = vector.broadcast %7 : vector<8x16x1xf32> to vector<8x16x8xf32>
    %9 = arith.mulf %0, %8 : vector<8x16x8xf32>
    %cst_7 = arith.constant dense<0.000000e+00> : vector<8x8xf32>
    %10 = vector.multi_reduction <add>, %9, %cst_7 [1] : vector<8x16x8xf32> to vector<8x8xf32>
    %11 = tpu.concatenate %2, %10, %5 in 0 : vector<8x8xf32>, vector<8x8xf32>, vector<8x8xf32> -> vector<24x8xf32>
    %c0_8 = arith.constant 0 : index
    %c0_9 = arith.constant 0 : index
    %12 = vector.load %arg3[%c0_8, %c0_9] : memref<8x32xf32, #tpu.memory_space<vmem>>, vector<8x32xf32>
    %cst_10 = arith.constant dense<0.000000e+00> : vector<24x32xf32>
    %13 = tpu.matmul %11, %12, %cst_10 {dimension_numbers = #tpu.dot_dimension_numbers<[1], [0], [0], [1], [0, 0, 1, 1], [], []>} : vector<24x8xf32>, vector<8x32xf32>, vector<24x32xf32> -> vector<24x32xf32>
    %c0_11 = arith.constant 0 : index
    %c0_12 = arith.constant 0 : index
    %14 = vector.load %arg4[%c0_11, %c0_12] : memref<32x32xf32, #tpu.memory_space<vmem>>, vector<32x32xf32>
    %cst_13 = arith.constant dense<0.000000e+00> : vector<24x32xf32>
    %15 = tpu.matmul %13, %14, %cst_13 {dimension_numbers = #tpu.dot_dimension_numbers<[1], [0], [0], [1], [0, 0, 1, 1], [], []>} : vector<24x32xf32>, vector<32x32xf32>, vector<24x32xf32> -> vector<24x32xf32>
    %c0_14 = arith.constant 0 : index
    %c0_15 = arith.constant 0 : index
    %16 = vector.load %arg5[%c0_14, %c0_15] : memref<1x32xf32, #tpu.memory_space<vmem>>, vector<1x32xf32>
    %17 = vector.broadcast %16 : vector<1x32xf32> to vector<24x32xf32>
    %18 = arith.addf %15, %17 : vector<24x32xf32>
    %cst_16 = arith.constant 0.000000e+00 : f32
    %19 = vector.broadcast %cst_16 : f32 to vector<24x32xf32>
    %20 = arith.maximumf %18, %19 : vector<24x32xf32>
    %21 = vector.extract_strided_slice %20 {offsets = [0, 0], sizes = [8, 32], strides = [1, 1]} : vector<24x32xf32> to vector<8x32xf32>
    %22 = vector.extract_strided_slice %20 {offsets = [8, 0], sizes = [8, 32], strides = [1, 1]} : vector<24x32xf32> to vector<8x32xf32>
    %23 = arith.subf %21, %22 : vector<8x32xf32>
    %24 = vector.extract_strided_slice %20 {offsets = [16, 0], sizes = [8, 32], strides = [1, 1]} : vector<24x32xf32> to vector<8x32xf32>
    %25 = arith.subf %23, %24 : vector<8x32xf32>
    %c0_17 = arith.constant 0 : index
    %c0_18 = arith.constant 0 : index
    %26 = vector.load %arg6[%c0_17, %c0_18] : memref<1x32xf32, #tpu.memory_space<vmem>>, vector<1x32xf32>
    %cst_19 = arith.constant dense<0.000000e+00> : vector<1x8xf32>
    %27 = tpu.matmul %26, %25, %cst_19 {dimension_numbers = #tpu.dot_dimension_numbers<[1], [1], [0], [0], [0, 0, 1, 0], [], []>} : vector<1x32xf32>, vector<8x32xf32>, vector<1x8xf32> -> vector<1x8xf32>
    %28 = vector.shape_cast %27 : vector<1x8xf32> to vector<1x1x8xf32>
    %c0_20 = arith.constant 0 : index
    %c0_21 = arith.constant 0 : index
    %c0_22 = arith.constant 0 : index
    %29 = vector.load %arg7[%c0_20, %c0_21, %c0_22] : memref<1x1x8xf32, #tpu.memory_space<vmem>>, vector<1x1x8xf32>
    tpu.vector_store %arg7[%c0_20, %c0_21, %c0_22], %28 {strides = array<i32>} : memref<1x1x8xf32, #tpu.memory_space<vmem>>, vector<1x1x8xf32>,
    return
  }
  func.func @transform_0(%arg0: i32) -> (i32, i32, i32) {
    %c0_i32 = arith.constant 0 : i32
    %c0_i32_0 = arith.constant 0 : i32
    %c0_i32_1 = arith.constant 0 : i32
    return %arg0, %c0_i32, %c0_i32_0 : i32, i32, i32
  }
  func.func @transform_1(%arg0: i32) -> (i32, i32, i32) {
    %c0_i32 = arith.constant 0 : i32
    %c0_i32_0 = arith.constant 0 : i32
    %c0_i32_1 = arith.constant 0 : i32
    return %arg0, %c0_i32, %c0_i32_0 : i32, i32, i32
  }
  func.func @transform_2(%arg0: i32) -> (i32, i32) {
    %c0_i32 = arith.constant 0 : i32
    %c0_i32_0 = arith.constant 0 : i32
    %c0_i32_1 = arith.constant 0 : i32
    return %c0_i32, %c0_i32_0 : i32, i32
  }
  func.func @transform_3(%arg0: i32) -> (i32, i32) {
    %c0_i32 = arith.constant 0 : i32
    %c0_i32_0 = arith.constant 0 : i32
    %c0_i32_1 = arith.constant 0 : i32
    return %c0_i32, %c0_i32_0 : i32, i32
  }
  func.func @transform_4(%arg0: i32) -> (i32, i32) {
    %c0_i32 = arith.constant 0 : i32
    %c0_i32_0 = arith.constant 0 : i32
    %c0_i32_1 = arith.constant 0 : i32
    return %c0_i32, %c0_i32_0 : i32, i32
  }
  func.func @transform_5(%arg0: i32) -> (i32, i32) {
    %c0_i32 = arith.constant 0 : i32
    %c0_i32_0 = arith.constant 0 : i32
    %c0_i32_1 = arith.constant 0 : i32
    return %c0_i32, %c0_i32_0 : i32, i32
  }
  func.func @transform_6(%arg0: i32) -> (i32, i32, i32) {
    %c0_i32 = arith.constant 0 : i32
    %c0_i32_0 = arith.constant 0 : i32
    %c0_i32_1 = arith.constant 0 : i32
    return %arg0, %c0_i32, %c0_i32_0 : i32, i32, i32
  }
}

</mosaic_0001>

<llo_original>
// kernel: tpu_custom_call.1
$region0: #{tpu_custom_call.1}
  #allocation0 [shape = 'u32[]', space=smem, size = 0x4, offset = 0x4, fixed_abs, tag = 'smem constant byte address 0x4 - core index']
  #allocation1 [shape = 'u32[72,128]{1,0:T(1,128)}', space=vmem, size = 0x9000, scoped, tag = 'internal scratch']
  %s0 = inlined_call_operand.vmem [shape: f32[8,16,8], index: 0, kind: input, shape index: {}]
  %s1 = inlined_call_operand.vmem [shape: f32[8,16,1], index: 1, kind: input, shape index: {}]
  %s2 = inlined_call_operand.vmem [shape: f32[8,32], index: 2, kind: input, shape index: {}]
  %s3 = inlined_call_operand.vmem [shape: f32[32,32], index: 3, kind: input, shape index: {}]
  %s4 = inlined_call_operand.vmem [shape: f32[1,32], index: 4, kind: input, shape index: {}]
  %s5 = inlined_call_operand.vmem [shape: f32[1,32], index: 5, kind: input, shape index: {}]
  %s6 = inlined_call_operand.hbm [shape: f32[1,1,8], index: 6, kind: output, shape index: {}]
  %s7 = sld [smem:[#allocation0]]
  $region34: #{tpu_custom_call.1} parent=0
    _
  %s9 = ssub.s32 1, %s7
  %s10 = scalar_select 0, %s9, %s7
  $region1: #{tpu_custom_call.1} parent=0
    #allocation2 [shape = 'u8[512]{0}', space=vmem, size = 0x400, scoped, tag = 'output window, operand 0, single buffered']
    #allocation3 [shape = 's32[1]{0}', space=sflag, size = 0x4, scoped, tag = 'scoped memory for tpu_custom_call.1']
    %11 = vsyncpa [#allocation3], 0
    // Predicated region
    $region2: #{tpu_custom_call.1} parent=1 // pred_check
      _
    $region3: #{tpu_custom_call.1} parent=1 // pred_check_branch
      %13 = sbr.rel (0) target = $region5
    $region4: #{tpu_custom_call.1} parent=1 // pred_region
      _
    $region5: #{tpu_custom_call.1} parent=1 // pred_fallthru
      _
    // Predicated region
    $region6: #{tpu_custom_call.1} parent=1 // pred_check
      _
    $region7: #{tpu_custom_call.1} parent=1 // pred_check_branch
      %15 = sbr.rel (0) target = $region9
    $region8: #{tpu_custom_call.1} parent=1 // pred_region
      _
    $region9: #{tpu_custom_call.1} parent=1 // pred_fallthru
      _
    // Predicated region
    $region10: #{tpu_custom_call.1} parent=1 // pred_check
      _
    $region11: #{tpu_custom_call.1} parent=1 // pred_check_branch
      %17 = sbr.rel (0) target = $region13
    $region12: #{tpu_custom_call.1} parent=1 // pred_region
      _
    $region13: #{tpu_custom_call.1} parent=1 // pred_fallthru
      _
    // Predicated region
    $region14: #{tpu_custom_call.1} parent=1 // pred_check
      _
    $region15: #{tpu_custom_call.1} parent=1 // pred_check_branch
      %19 = sbr.rel (0) target = $region17
    $region16: #{tpu_custom_call.1} parent=1 // pred_region
      _
    $region17: #{tpu_custom_call.1} parent=1 // pred_fallthru
      _
    // Predicated region
    $region18: #{tpu_custom_call.1} parent=1 // pred_check
      _
    $region19: #{tpu_custom_call.1} parent=1 // pred_check_branch
      %21 = sbr.rel (0) target = $region21
    $region20: #{tpu_custom_call.1} parent=1 // pred_region
      _
    $region21: #{tpu_custom_call.1} parent=1 // pred_fallthru
      _
    // Predicated region
    $region22: #{tpu_custom_call.1} parent=1 // pred_check
      _
    $region23: #{tpu_custom_call.1} parent=1 // pred_check_branch
      %23 = sbr.rel (0) target = $region25
    $region24: #{tpu_custom_call.1} parent=1 // pred_region
      _
    $region25: #{tpu_custom_call.1} parent=1 // pred_fallthru
      _
    %v24 = vld [vmem:[%s0] sm:$0xff]
    %v25 = vld [vmem:[%s0 + $0x8] sm:$0xff]
    %v26 = vld [vmem:[%s0 + $0x10] sm:$0xff]
    %v27 = vld [vmem:[%s0 + $0x18] sm:$0xff]
    %v28 = vld [vmem:[%s0 + $0x20] sm:$0xff]
    %v29 = vld [vmem:[%s0 + $0x28] sm:$0xff]
    %v30 = vld [vmem:[%s0 + $0x30] sm:$0xff]
    %v31 = vld [vmem:[%s0 + $0x38] sm:$0xff]
    %v32 = vld [vmem:[%s0 + $0x40] sm:$0xff]
    %v33 = vld [vmem:[%s0 + $0x48] sm:$0xff]
    %v34 = vld [vmem:[%s0 + $0x50] sm:$0xff]
    %v35 = vld [vmem:[%s0 + $0x58] sm:$0xff]
    %v36 = vld [vmem:[%s0 + $0x60] sm:$0xff]
    %v37 = vld [vmem:[%s0 + $0x68] sm:$0xff]
    %v38 = vld [vmem:[%s0 + $0x70] sm:$0xff]
    %v39 = vld [vmem:[%s0 + $0x78] sm:$0xff]
    %v40 = vld [vmem:[%s1] sm:$0xff]
    %v41 = vld [vmem:[%s1 + $0x8] sm:$0xff]
    %v42 = vld [vmem:[%s1 + $0x10] sm:$0xff]
    %v43 = vld [vmem:[%s1 + $0x18] sm:$0xff]
    %v44 = vld [vmem:[%s1 + $0x20] sm:$0xff]
    %v45 = vld [vmem:[%s1 + $0x28] sm:$0xff]
    %v46 = vld [vmem:[%s1 + $0x30] sm:$0xff]
    %v47 = vld [vmem:[%s1 + $0x38] sm:$0xff]
    %v48 = vld [vmem:[%s1 + $0x40] sm:$0xff]
    %v49 = vld [vmem:[%s1 + $0x48] sm:$0xff]
    %v50 = vld [vmem:[%s1 + $0x50] sm:$0xff]
    %v51 = vld [vmem:[%s1 + $0x58] sm:$0xff]
    %v52 = vld [vmem:[%s1 + $0x60] sm:$0xff]
    %v53 = vld [vmem:[%s1 + $0x68] sm:$0xff]
    %v54 = vld [vmem:[%s1 + $0x70] sm:$0xff]
    %v55 = vld [vmem:[%s1 + $0x78] sm:$0xff]
    %vm56 = vcmask 64512
    %v57 = vsel %vm56, %v24, 0.0
    %v58 = vsel %vm56, %v25, 0.0
    %v59 = vadd.f32 %v57, %v58
    %v60 = vrot.slane %v59, 4
    %v61 = vadd.f32 %v59, %v60
    %v62 = vrot.slane %v61, 2
    %v63 = vadd.f32 %v61, %v62
    %v64 = vrot.slane %v63, 1
    %v65 = vadd.f32 %v63, %v64
    %v66 = vsel %vm56, %v26, 0.0
    %v67 = vsel %vm56, %v27, 0.0
    %v68 = vadd.f32 %v66, %v67
    %v69 = vrot.slane %v68, 4
    %v70 = vadd.f32 %v68, %v69
    %v71 = vrot.slane %v70, 2
    %v72 = vadd.f32 %v70, %v71
    %v73 = vrot.slane %v72, 1
    %v74 = vadd.f32 %v72, %v73
    %v75 = vsel %vm56, %v28, 0.0
    %v76 = vsel %vm56, %v29, 0.0
    %v77 = vadd.f32 %v75, %v76
    %v78 = vrot.slane %v77, 4
    %v79 = vadd.f32 %v77, %v78
    %v80 = vrot.slane %v79, 2
    %v81 = vadd.f32 %v79, %v80
    %v82 = vrot.slane %v81, 1
    %v83 = vadd.f32 %v81, %v82
    %v84 = vsel %vm56, %v30, 0.0
    %v85 = vsel %vm56, %v31, 0.0
    %v86 = vadd.f32 %v84, %v85
    %v87 = vrot.slane %v86, 4
    %v88 = vadd.f32 %v86, %v87
    %v89 = vrot.slane %v88, 2
    %v90 = vadd.f32 %v88, %v89
    %v91 = vrot.slane %v90, 1
    %v92 = vadd.f32 %v90, %v91
    %v93 = vsel %vm56, %v32, 0.0
    %v94 = vsel %vm56, %v33, 0.0
    %v95 = vadd.f32 %v93, %v94
    %v96 = vrot.slane %v95, 4
    %v97 = vadd.f32 %v95, %v96
    %v98 = vrot.slane %v97, 2
    %v99 = vadd.f32 %v97, %v98
    %v100 = vrot.slane %v99, 1
    %v101 = vadd.f32 %v99, %v100
    %v102 = vsel %vm56, %v34, 0.0
    %v103 = vsel %vm56, %v35, 0.0
    %v104 = vadd.f32 %v102, %v103
    %v105 = vrot.slane %v104, 4
    %v106 = vadd.f32 %v104, %v105
    %v107 = vrot.slane %v106, 2
    %v108 = vadd.f32 %v106, %v107
    %v109 = vrot.slane %v108, 1
    %v110 = vadd.f32 %v108, %v109
    %v111 = vsel %vm56, %v36, 0.0
    %v112 = vsel %vm56, %v37, 0.0
    %v113 = vadd.f32 %v111, %v112
    %v114 = vrot.slane %v113, 4
    %v115 = vadd.f32 %v113, %v114
    %v116 = vrot.slane %v115, 2
    %v117 = vadd.f32 %v115, %v116
    %v118 = vrot.slane %v117, 1
    %v119 = vadd.f32 %v117, %v118
    %v120 = vsel %vm56, %v38, 0.0
    %v121 = vsel %vm56, %v39, 0.0
    %v122 = vadd.f32 %v120, %v121
    %v123 = vrot.slane %v122, 4
    %v124 = vadd.f32 %v122, %v123
    %v125 = vrot.slane %v124, 2
    %v126 = vadd.f32 %v124, %v125
    %v127 = vrot.slane %v126, 1
    %v128 = vadd.f32 %v126, %v127
    %130 = vset.pattern.permute.xlu0 0
    %131 = vperm.xlu0 %130, %v40
    %v132 = vpop.permute.xlu0 %131
    %135 = vset.pattern.permute.xlu0 0
    %136 = vperm.xlu0 %135, %v41
    %v137 = vpop.permute.xlu0 %136
    %140 = vset.pattern.permute.xlu0 0
    %141 = vperm.xlu0 %140, %v42
    %v142 = vpop.permute.xlu0 %141
    %145 = vset.pattern.permute.xlu0 0
    %146 = vperm.xlu0 %145, %v43
    %v147 = vpop.permute.xlu0 %146
    %150 = vset.pattern.permute.xlu0 0
    %151 = vperm.xlu0 %150, %v44
    %v152 = vpop.permute.xlu0 %151
    %155 = vset.pattern.permute.xlu0 0
    %156 = vperm.xlu0 %155, %v45
    %v157 = vpop.permute.xlu0 %156
    %160 = vset.pattern.permute.xlu0 0
    %161 = vperm.xlu0 %160, %v46
    %v162 = vpop.permute.xlu0 %161
    %165 = vset.pattern.permute.xlu0 0
    %166 = vperm.xlu0 %165, %v47
    %v167 = vpop.permute.xlu0 %166
    %170 = vset.pattern.permute.xlu0 0
    %171 = vperm.xlu0 %170, %v48
    %v172 = vpop.permute.xlu0 %171
    %175 = vset.pattern.permute.xlu0 0
    %176 = vperm.xlu0 %175, %v49
    %v177 = vpop.permute.xlu0 %176
    %180 = vset.pattern.permute.xlu0 0
    %181 = vperm.xlu0 %180, %v50
    %v182 = vpop.permute.xlu0 %181
    %185 = vset.pattern.permute.xlu0 0
    %186 = vperm.xlu0 %185, %v51
    %v187 = vpop.permute.xlu0 %186
    %190 = vset.pattern.permute.xlu0 0
    %191 = vperm.xlu0 %190, %v52
    %v192 = vpop.permute.xlu0 %191
    %195 = vset.pattern.permute.xlu0 0
    %196 = vperm.xlu0 %195, %v53
    %v197 = vpop.permute.xlu0 %196
    %200 = vset.pattern.permute.xlu0 0
    %201 = vperm.xlu0 %200, %v54
    %v202 = vpop.permute.xlu0 %201
    %205 = vset.pattern.permute.xlu0 0
    %206 = vperm.xlu0 %205, %v55
    %v207 = vpop.permute.xlu0 %206
    %v209 = vmul.f32 %v24, %v132
    %v210 = vmul.f32 %v25, %v137
    %v211 = vmul.f32 %v26, %v142
    %v212 = vmul.f32 %v27, %v147
    %v213 = vmul.f32 %v28, %v152
    %v214 = vmul.f32 %v29, %v157
    %v215 = vmul.f32 %v30, %v162
    %v216 = vmul.f32 %v31, %v167
    %v217 = vmul.f32 %v32, %v172
    %v218 = vmul.f32 %v33, %v177
    %v219 = vmul.f32 %v34, %v182
    %v220 = vmul.f32 %v35, %v187
    %v221 = vmul.f32 %v36, %v192
    %v222 = vmul.f32 %v37, %v197
    %v223 = vmul.f32 %v38, %v202
    %v224 = vmul.f32 %v39, %v207
    %v225 = vsel %vm56, %v209, 0.0
    %v226 = vsel %vm56, %v210, 0.0
    %v227 = vadd.f32 %v225, %v226
    %v228 = vrot.slane %v227, 4
    %v229 = vadd.f32 %v227, %v228
    %v230 = vrot.slane %v229, 2
    %v231 = vadd.f32 %v229, %v230
    %v232 = vrot.slane %v231, 1
    %v233 = vadd.f32 %v231, %v232
    %v234 = vsel %vm56, %v211, 0.0
    %v235 = vsel %vm56, %v212, 0.0
    %v236 = vadd.f32 %v234, %v235
    %v237 = vrot.slane %v236, 4
    %v238 = vadd.f32 %v236, %v237
    %v239 = vrot.slane %v238, 2
    %v240 = vadd.f32 %v238, %v239
    %v241 = vrot.slane %v240, 1
    %v242 = vadd.f32 %v240, %v241
    %v243 = vsel %vm56, %v213, 0.0
    %v244 = vsel %vm56, %v214, 0.0
    %v245 = vadd.f32 %v243, %v244
    %v246 = vrot.slane %v245, 4
    %v247 = vadd.f32 %v245, %v246
    %v248 = vrot.slane %v247, 2
    %v249 = vadd.f32 %v247, %v248
    %v250 = vrot.slane %v249, 1
    %v251 = vadd.f32 %v249, %v250
    %v252 = vsel %vm56, %v215, 0.0
    %v253 = vsel %vm56, %v216, 0.0
    %v254 = vadd.f32 %v252, %v253
    %v255 = vrot.slane %v254, 4
    %v256 = vadd.f32 %v254, %v255
    %v257 = vrot.slane %v256, 2
    %v258 = vadd.f32 %v256, %v257
    %v259 = vrot.slane %v258, 1
    %v260 = vadd.f32 %v258, %v259
    %v261 = vsel %vm56, %v217, 0.0
    %v262 = vsel %vm56, %v218, 0.0
    %v263 = vadd.f32 %v261, %v262
    %v264 = vrot.slane %v263, 4
    %v265 = vadd.f32 %v263, %v264
    %v266 = vrot.slane %v265, 2
    %v267 = vadd.f32 %v265, %v266
    %v268 = vrot.slane %v267, 1
    %v269 = vadd.f32 %v267, %v268
    %v270 = vsel %vm56, %v219, 0.0
    %v271 = vsel %vm56, %v220, 0.0
    %v272 = vadd.f32 %v270, %v271
    %v273 = vrot.slane %v272, 4
    %v274 = vadd.f32 %v272, %v273
    %v275 = vrot.slane %v274, 2
    %v276 = vadd.f32 %v274, %v275
    %v277 = vrot.slane %v276, 1
    %v278 = vadd.f32 %v276, %v277
    %v279 = vsel %vm56, %v221, 0.0
    %v280 = vsel %vm56, %v222, 0.0
    %v281 = vadd.f32 %v279, %v280
    %v282 = vrot.slane %v281, 4
    %v283 = vadd.f32 %v281, %v282
    %v284 = vrot.slane %v283, 2
    %v285 = vadd.f32 %v283, %v284
    %v286 = vrot.slane %v285, 1
    %v287 = vadd.f32 %v285, %v286
    %v288 = vsel %vm56, %v223, 0.0
    %v289 = vsel %vm56, %v224, 0.0
    %v290 = vadd.f32 %v288, %v289
    %v291 = vrot.slane %v290, 4
    %v292 = vadd.f32 %v290, %v291
    %v293 = vrot.slane %v292, 2
    %v294 = vadd.f32 %v292, %v293
    %v295 = vrot.slane %v294, 1
    %v296 = vadd.f32 %v294, %v295
    %v297 = vsub.f32 1.0, %v40
    %v298 = vsub.f32 1.0, %v41
    %v299 = vsub.f32 1.0, %v42
    %v300 = vsub.f32 1.0, %v43
    %v301 = vsub.f32 1.0, %v44
    %v302 = vsub.f32 1.0, %v45
    %v303 = vsub.f32 1.0, %v46
    %v304 = vsub.f32 1.0, %v47
    %v305 = vsub.f32 1.0, %v48
    %v306 = vsub.f32 1.0, %v49
    %v307 = vsub.f32 1.0, %v50
    %v308 = vsub.f32 1.0, %v51
    %v309 = vsub.f32 1.0, %v52
    %v310 = vsub.f32 1.0, %v53
    %v311 = vsub.f32 1.0, %v54
    %v312 = vsub.f32 1.0, %v55
    %314 = vset.pattern.permute.xlu0 0
    %315 = vperm.xlu0 %314, %v297
    %v316 = vpop.permute.xlu0 %315
    %319 = vset.pattern.permute.xlu0 0
    %320 = vperm.xlu0 %319, %v298
    %v321 = vpop.permute.xlu0 %320
    %324 = vset.pattern.permute.xlu0 0
    %325 = vperm.xlu0 %324, %v299
    %v326 = vpop.permute.xlu0 %325
    %329 = vset.pattern.permute.xlu0 0
    %330 = vperm.xlu0 %329, %v300
    %v331 = vpop.permute.xlu0 %330
    %334 = vset.pattern.permute.xlu0 0
    %335 = vperm.xlu0 %334, %v301
    %v336 = vpop.permute.xlu0 %335
    %339 = vset.pattern.permute.xlu0 0
    %340 = vperm.xlu0 %339, %v302
    %v341 = vpop.permute.xlu0 %340
    %344 = vset.pattern.permute.xlu0 0
    %345 = vperm.xlu0 %344, %v303
    %v346 = vpop.permute.xlu0 %345
    %349 = vset.pattern.permute.xlu0 0
    %350 = vperm.xlu0 %349, %v304
    %v351 = vpop.permute.xlu0 %350
    %354 = vset.pattern.permute.xlu0 0
    %355 = vperm.xlu0 %354, %v305
    %v356 = vpop.permute.xlu0 %355
    %359 = vset.pattern.permute.xlu0 0
    %360 = vperm.xlu0 %359, %v306
    %v361 = vpop.permute.xlu0 %360
    %364 = vset.pattern.permute.xlu0 0
    %365 = vperm.xlu0 %364, %v307
    %v366 = vpop.permute.xlu0 %365
    %369 = vset.pattern.permute.xlu0 0
    %370 = vperm.xlu0 %369, %v308
    %v371 = vpop.permute.xlu0 %370
    %374 = vset.pattern.permute.xlu0 0
    %375 = vperm.xlu0 %374, %v309
    %v376 = vpop.permute.xlu0 %375
    %379 = vset.pattern.permute.xlu0 0
    %380 = vperm.xlu0 %379, %v310
    %v381 = vpop.permute.xlu0 %380
    %384 = vset.pattern.permute.xlu0 0
    %385 = vperm.xlu0 %384, %v311
    %v386 = vpop.permute.xlu0 %385
    %389 = vset.pattern.permute.xlu0 0
    %390 = vperm.xlu0 %389, %v312
    %v391 = vpop.permute.xlu0 %390
    %v393 = vmul.f32 %v24, %v316
    %v394 = vmul.f32 %v25, %v321
    %v395 = vmul.f32 %v26, %v326
    %v396 = vmul.f32 %v27, %v331
    %v397 = vmul.f32 %v28, %v336
    %v398 = vmul.f32 %v29, %v341
    %v399 = vmul.f32 %v30, %v346
    %v400 = vmul.f32 %v31, %v351
    %v401 = vmul.f32 %v32, %v356
    %v402 = vmul.f32 %v33, %v361
    %v403 = vmul.f32 %v34, %v366
    %v404 = vmul.f32 %v35, %v371
    %v405 = vmul.f32 %v36, %v376
    %v406 = vmul.f32 %v37, %v381
    %v407 = vmul.f32 %v38, %v386
    %v408 = vmul.f32 %v39, %v391
    %v409 = vsel %vm56, %v393, 0.0
    %v410 = vsel %vm56, %v394, 0.0
    %v411 = vadd.f32 %v409, %v410
    %v412 = vrot.slane %v411, 4
    %v413 = vadd.f32 %v411, %v412
    %v414 = vrot.slane %v413, 2
    %v415 = vadd.f32 %v413, %v414
    %v416 = vrot.slane %v415, 1
    %v417 = vadd.f32 %v415, %v416
    %v418 = vsel %vm56, %v395, 0.0
    %v419 = vsel %vm56, %v396, 0.0
    %v420 = vadd.f32 %v418, %v419
    %v421 = vrot.slane %v420, 4
    %v422 = vadd.f32 %v420, %v421
    %v423 = vrot.slane %v422, 2
    %v424 = vadd.f32 %v422, %v423
    %v425 = vrot.slane %v424, 1
    %v426 = vadd.f32 %v424, %v425
    %v427 = vsel %vm56, %v397, 0.0
    %v428 = vsel %vm56, %v398, 0.0
    %v429 = vadd.f32 %v427, %v428
    %v430 = vrot.slane %v429, 4
    %v431 = vadd.f32 %v429, %v430
    %v432 = vrot.slane %v431, 2
    %v433 = vadd.f32 %v431, %v432
    %v434 = vrot.slane %v433, 1
    %v435 = vadd.f32 %v433, %v434
    %v436 = vsel %vm56, %v399, 0.0
    %v437 = vsel %vm56, %v400, 0.0
    %v438 = vadd.f32 %v436, %v437
    %v439 = vrot.slane %v438, 4
    %v440 = vadd.f32 %v438, %v439
    %v441 = vrot.slane %v440, 2
    %v442 = vadd.f32 %v440, %v441
    %v443 = vrot.slane %v442, 1
    %v444 = vadd.f32 %v442, %v443
    %v445 = vsel %vm56, %v401, 0.0
    %v446 = vsel %vm56, %v402, 0.0
    %v447 = vadd.f32 %v445, %v446
    %v448 = vrot.slane %v447, 4
    %v449 = vadd.f32 %v447, %v448
    %v450 = vrot.slane %v449, 2
    %v451 = vadd.f32 %v449, %v450
    %v452 = vrot.slane %v451, 1
    %v453 = vadd.f32 %v451, %v452
    %v454 = vsel %vm56, %v403, 0.0
    %v455 = vsel %vm56, %v404, 0.0
    %v456 = vadd.f32 %v454, %v455
    %v457 = vrot.slane %v456, 4
    %v458 = vadd.f32 %v456, %v457
    %v459 = vrot.slane %v458, 2
    %v460 = vadd.f32 %v458, %v459
    %v461 = vrot.slane %v460, 1
    %v462 = vadd.f32 %v460, %v461
    %v463 = vsel %vm56, %v405, 0.0
    %v464 = vsel %vm56, %v406, 0.0
    %v465 = vadd.f32 %v463, %v464
    %v466 = vrot.slane %v465, 4
    %v467 = vadd.f32 %v465, %v466
    %v468 = vrot.slane %v467, 2
    %v469 = vadd.f32 %v467, %v468
    %v470 = vrot.slane %v469, 1
    %v471 = vadd.f32 %v469, %v470
    %v472 = vsel %vm56, %v407, 0.0
    %v473 = vsel %vm56, %v408, 0.0
    %v474 = vadd.f32 %v472, %v473
    %v475 = vrot.slane %v474, 4
    %v476 = vadd.f32 %v474, %v475
    %v477 = vrot.slane %v476, 2
    %v478 = vadd.f32 %v476, %v477
    %v479 = vrot.slane %v478, 1
    %v480 = vadd.f32 %v478, %v479
    %vm489 = vcmask 1041409
    %v490 = vsel %vm489, %v74, %v65
    %vm491 = vcmask 1042434
    %v492 = vsel %vm491, %v83, %v490
    %vm493 = vcmask 1043459
    %v494 = vsel %vm493, %v92, %v492
    %vm495 = vcmask 1044484
    %v496 = vsel %vm495, %v101, %v494
    %vm497 = vcmask 1045509
    %v498 = vsel %vm497, %v110, %v496
    %vm499 = vcmask 1046534
    %v500 = vsel %vm499, %v119, %v498
    %vm501 = vcmask 1047559
    %v502 = vsel %vm501, %v128, %v500
    %v511 = vsel %vm489, %v426, %v417
    %v512 = vsel %vm491, %v435, %v511
    %v513 = vsel %vm493, %v444, %v512
    %v514 = vsel %vm495, %v453, %v513
    %v515 = vsel %vm497, %v462, %v514
    %v516 = vsel %vm499, %v471, %v515
    %v517 = vsel %vm501, %v480, %v516
    %v526 = vsel %vm489, %v242, %v233
    %v527 = vsel %vm491, %v251, %v526
    %v528 = vsel %vm493, %v260, %v527
    %v529 = vsel %vm495, %v269, %v528
    %v530 = vsel %vm497, %v278, %v529
    %v531 = vsel %vm499, %v287, %v530
    %v532 = vsel %vm501, %v296, %v531
    %v533 = vld [vmem:[%s2] sm:$0xff]
    %v534 = vsel %vm56, %v502, 0
    %v536 = vsel %vm56, %v517, 0
    %v538 = vsel %vm56, %v532, 0
    %540 = vmatpush.msra.mxu0 0.0
    %541 = vmatpush.msra.mxu0 0.0
    %542 = vmatpush.msra.mxu0 0.0
    %543 = vmatpush.msra.mxu0 0.0
    %544 = vmatpush.msra.mxu0 0.0
    %545 = vmatpush.msra.mxu0 0.0
    %546 = vmatpush.msra.mxu0 0.0
    %547 = vmatpush.msra.mxu0 0.0
    %548 = vmatpush.msra.mxu0 0.0
    %549 = vmatpush.msra.mxu0 0.0
    %550 = vmatpush.msra.mxu0 0.0
    %551 = vmatpush.msra.mxu0 0.0
    %552 = vmatpush.msra.mxu0 0.0
    %553 = vmatpush.msra.mxu0 0.0
    %554 = vmatpush.msra.mxu0 0.0
    %555 = vmatpush.msra.mxu0 %v533
    %556 = vmatmul.f32.gmra.mxu0 %v534
    %v557 = vpop.f32.mrf.mxu0
    %v558 = vadd.f32 0.0, %v557
    %559 = vmatmul.f32.gmra.mxu0 %v536
    %v560 = vpop.f32.mrf.mxu0
    %v561 = vadd.f32 0.0, %v560
    %562 = vmatmul.f32.gmra.mxu0 %v538
    %v563 = vpop.f32.mrf.mxu0
    %v564 = vadd.f32 0.0, %v563
    %565 = vdwg.mxu0
    %v566 = vld [vmem:[%s3] sm:$0xff]
    %v567 = vld [vmem:[%s3 + $0x8] sm:$0xff]
    %v568 = vld [vmem:[%s3 + $0x10] sm:$0xff]
    %v569 = vld [vmem:[%s3 + $0x18] sm:$0xff]
    %v570 = vld [vmem:[%s4] sm:$0x1]
    %v572 = vperm.slane %v570, 0
    %vm574 = vcmask 261120
    %v576 = vsel %vm574, %v558, 0
    %v579 = vsel %vm574, %v561, 0
    %v582 = vsel %vm574, %v564, 0
    %584 = vmatpush.msra.mxu0 0.0
    %585 = vmatpush.msra.mxu0 0.0
    %586 = vmatpush.msra.mxu0 0.0
    %587 = vmatpush.msra.mxu0 0.0
    %588 = vmatpush.msra.mxu0 0.0
    %589 = vmatpush.msra.mxu0 0.0
    %590 = vmatpush.msra.mxu0 0.0
    %591 = vmatpush.msra.mxu0 0.0
    %592 = vmatpush.msra.mxu0 0.0
    %593 = vmatpush.msra.mxu0 0.0
    %594 = vmatpush.msra.mxu0 0.0
    %595 = vmatpush.msra.mxu0 0.0
    %596 = vmatpush.msra.mxu0 %v569
    %597 = vmatpush.msra.mxu0 %v568
    %598 = vmatpush.msra.mxu0 %v567
    %599 = vmatpush.msra.mxu0 %v566
    %600 = vmatmul.f32.gmra.mxu0 %v576
    %v601 = vpop.f32.mrf.mxu0
    %v602 = vadd.f32 %v572, %v601
    %603 = vmatmul.f32.gmra.mxu0 %v579
    %v604 = vpop.f32.mrf.mxu0
    %v605 = vadd.f32 %v572, %v604
    %606 = vmatmul.f32.gmra.mxu0 %v582
    %v607 = vpop.f32.mrf.mxu0
    %v608 = vadd.f32 %v572, %v607
    %609 = vdwg.mxu0
    %v610 = vmax.f32 %v602, 0.0
    %v611 = vmax.f32 %v605, 0.0
    %v612 = vmax.f32 %v608, 0.0
    %v613 = vsub.f32 %v610, %v611
    %v614 = vsub.f32 %v613, %v612
    %v615 = vld [vmem:[%s5] sm:$0x1]
    %v617 = vsel %vm574, %v615, 0
    %v620 = vsel %vm574, %v614, 0
    %622 = vmatpush.xpose.msra.mxu0 0.0
    %623 = vmatpush.xpose.msra.mxu0 0.0
    %624 = vmatpush.xpose.msra.mxu0 0.0
    %625 = vmatpush.xpose.msra.mxu0 0.0
    %626 = vmatpush.xpose.msra.mxu0 0.0
    %627 = vmatpush.xpose.msra.mxu0 0.0
    %628 = vmatpush.xpose.msra.mxu0 0.0
    %629 = vmatpush.xpose.msra.mxu0 0.0
    %630 = vmatpush.xpose.msra.mxu0 0.0
    %631 = vmatpush.xpose.msra.mxu0 0.0
    %632 = vmatpush.xpose.msra.mxu0 0.0
    %633 = vmatpush.xpose.msra.mxu0 0.0
    %634 = vmatpush.xpose.msra.mxu0 0.0
    %635 = vmatpush.xpose.msra.mxu0 0.0
    %636 = vmatpush.xpose.msra.mxu0 0.0
    %637 = vmatpush.xpose.msra.mxu0 %v620
    %638 = vmatmul.f32.gmra.mxu0 %v617
    %v639 = vpop.f32.mrf.mxu0
    %v640 = vadd.f32 0.0, %v639
    %641 = vdwg.mxu0
    %vm642 = vcmask 57344
    %643 = vst.msk [vmem:[#allocation2] sm:$0x1] %vm642, %v640
    // Predicated region
    $region26: #{tpu_custom_call.1} parent=1 // pred_check
      _
    $region27: #{tpu_custom_call.1} parent=1 // pred_check_branch
      %645 = sbr.rel (0) target = $region29
    $region28: #{tpu_custom_call.1} parent=1 // pred_region
      %647 = vsyncadd [#allocation3], 0
      %s649 = sshll.u32 [#allocation2], 4
      %s650 = int_to_ptr.vmem [resolvable:$true] %s649
      %s651 = sshll.u32 %s6, 4
      %s652 = int_to_ptr.hbm [resolvable:$true] %s651
      %654 = dma.vmem_to_hbm [thread:$0]  %s650, 16, %s652, [#allocation3]
    $region29: #{tpu_custom_call.1} parent=1 // pred_fallthru
      _
    // Predicated region
    $region30: #{tpu_custom_call.1} parent=1 // pred_check
      _
    $region31: #{tpu_custom_call.1} parent=1 // pred_check_branch
      %656 = sbr.rel (0) target = $region33
    $region32: #{tpu_custom_call.1} parent=1 // pred_region
      %658 = dma.done [#allocation3], 16
    $region33: #{tpu_custom_call.1} parent=1 // pred_fallthru
      _
    %659 = vsyncpa [#allocation3], 1

</llo_original>
